<compile_context>
chip_gen: v7x
topology: tpu7x:2x2x1
jax: 0.10.0
libtpu: 0.0.40
codegen_flags: <defaults>
</compile_context>

<pallas_src>
import jax
import jax.numpy as jnp
from jax.experimental import pallas as pl
from jax.experimental.pallas import tpu as pltpu


# ----------------------------- Pallas kernel ------------------------------ #

def _make_transpose_kernel(n):
    """Build a kernel that transposes n independent (C, HW_i) tiles to (HW_i, C)."""
    def kernel(*refs):
        x_refs, o_refs = refs[:n], refs[n:]
        for x_ref, o_ref in zip(x_refs, o_refs):
            # Pure XLU transpose of a lane-dense (C, HW) tile.
            o_ref[...] = jnp.transpose(x_ref[...], (1, 0))
    return kernel


def _plan_groups(flats, budget_bytes):
    """Split the tensor list into launch groups whose per-grid-step VMEM
    footprint (double-buffered input block + output block) fits the budget."""
    groups, cur, cur_bytes = [], [], 0
    for f in flats:
        _, C, hw = f.shape
        itemsize = jnp.dtype(f.dtype).itemsize
        # in block (C, hw) + out block (hw, C), each double-buffered by Pallas.
        step_bytes = 2 * (C * hw + hw * C) * itemsize
        if cur and cur_bytes + step_bytes > budget_bytes:
            groups.append(cur)
            cur, cur_bytes = [], 0
        cur.append(f)
        cur_bytes += step_bytes
    if cur:
        groups.append(cur)
    return groups


def _flatten_transpose_group(flats):
    """One pallas_call transposing every (B, C, HW_i) in `flats` to (B, HW_i, C)."""
    B, C = flats[0].shape[:2]
    hws = [f.shape[2] for f in flats]
    n = len(flats)

    in_specs = [pl.BlockSpec((None, C, hw), lambda b: (b, 0, 0)) for hw in hws]
    out_specs = tuple(
        pl.BlockSpec((None, hw, C), lambda b: (b, 0, 0)) for hw in hws)
    out_shape = tuple(
        jax.ShapeDtypeStruct((B, hw, C), f.dtype) for hw, f in zip(hws, flats))

    outs = pl.pallas_call(
        _make_transpose_kernel(n),
        out_shape=out_shape,
        grid=(B,),
        in_specs=in_specs,
        out_specs=out_specs,
        compiler_params=pltpu.CompilerParams(
            dimension_semantics=("parallel",)),
    )(*flats)
    return list(outs) if isinstance(outs, (tuple, list)) else [outs]


def flatten_transpose_many(xs, vmem_budget_bytes=20 << 20):
    """Batched NCHW -> (B, H*W, C); as few pallas_call launches as VMEM allows.

    xs: list of arrays shaped (B, C, H_i, W_i) (same B, C, dtype).
    Returns a list of arrays shaped (B, H_i*W_i, C), each equal to
    x.flatten(2).transpose(1, 2) of the corresponding input.
    """
    if not xs:
        return []
    B, C = xs[0].shape[:2]
    # Free HBM reshape (NCHW is contiguous): (B, C, H, W) -> (B, C, H*W).
    flats = [x.reshape(B, C, x.shape[2] * x.shape[3]) for x in xs]

    results = []
    for group in _plan_groups(flats, vmem_budget_bytes):
        results.extend(_flatten_transpose_group(group))
    return results


# --------------------------- module re-implementation --------------------- #

def _single_round_com(feature_dict_list, ref_points, spatial_shapes,
                      level_start_idx, record_len):
    # TODO(synk): `sinlg_round_com` is an external nn.Module passed to __init__
    # whose forward is not defined in the reference source; modelled here as an
    # identity round that reports the number of exchanged feature elements.
    vol = 0
    for fd in feature_dict_list:
        for v in fd.values():
            vol += int(v.size)
    return feature_dict_list, jnp.asarray(vol, dtype=jnp.int32)


class RoundsCommunication:
    def __init__(self, sinlg_round_com, num_rounds, num_agents, scale_level):
        # _get_clones -> num_rounds independent copies; our round fn is stateless.
        self.communications = [sinlg_round_com for _ in range(num_rounds)]
        self.num_agents = num_agents
        self.scale_level = scale_level

    def __call__(self, feature_dict_list, spatial_shapes, level_start_idx,
                 ref_points, record_len):
        # Collect every (agent, level) tensor that needs the relayout, then run
        # the batched pallas_call path for all of them (normally one launch
        # instead of num_agents * scale_level launches).
        pending = []   # (feature_dict, out_key, src_key, array)
        for agent_idx, feature_dict in enumerate(feature_dict_list, start=1):
            for lvl in range(self.scale_level):
                scale = 2 ** (lvl + 1)
                out_key = (f'spatialAttn_result_{scale}x' if agent_idx == 1
                           else f'temporalAttn_result_{scale}x')
                src_key = f'proj_align_src_{scale}x'
                if feature_dict.get(out_key) is None:
                    pending.append((feature_dict, out_key, src_key,
                                    feature_dict[src_key]))

        if pending:
            results = flatten_transpose_many([p[3] for p in pending])
            for (feature_dict, out_key, src_key, _), res in zip(pending, results):
                feature_dict[out_key] = res
                feature_dict.pop(src_key)

        total_comm_volumes = []
        for communication in self.communications:
            feature_dict_list, single_round_comm_volume = communication(
                feature_dict_list, ref_points, spatial_shapes,
                level_start_idx, record_len)
            total_comm_volumes.append(single_round_comm_volume)
        return feature_dict_list, total_comm_volumes


# --------------------------------- main ----------------------------------- #

if __name__ == "__main__":
    key = jax.random.PRNGKey(0)

    B, C = 2, 128            # C = 128 -> lane-dense output stores
    scale_level = 2
    num_agents = 2
    num_rounds = 2
    # HW multiples of 128 -> lane-dense input loads: 2x: 32*16=512, 4x: 16*8=128
    shapes = {2: (32, 16), 4: (16, 8)}

    feature_dict_list = []
    for agent in range(num_agents):
        fd = {}
        for lvl in range(scale_level):
            scale = 2 ** (lvl + 1)
            H, W = shapes[scale]
            key, sub = jax.random.split(key)
            fd[f'proj_align_src_{scale}x'] = jax.random.normal(
                sub, (B, C, H, W), dtype=jnp.float32)
        feature_dict_list.append(fd)

    # Keep raw copies for a correctness check against the pure-JAX reference.
    raw_copies = [dict(fd) for fd in feature_dict_list]

    spatial_shapes = jnp.array([[32, 16], [16, 8]], dtype=jnp.int32)
    level_start_idx = jnp.array([0, 32 * 16], dtype=jnp.int32)
    n_tokens = 32 * 16 + 16 * 8
    key, sub = jax.random.split(key)
    ref_points = jax.random.uniform(sub, (B, n_tokens, scale_level, 2),
                                    dtype=jnp.float32)
    record_len = jnp.array([num_agents], dtype=jnp.int32)

    module = RoundsCommunication(_single_round_com, num_rounds, num_agents,
                                 scale_level)
    out_feature_dict_list, total_comm_volumes = module(
        feature_dict_list, spatial_shapes, level_start_idx, ref_points,
        record_len)

    # Verify against the pure-JAX reference of flatten(2).transpose(1, 2).
    for agent_idx, (fd_out, fd_raw) in enumerate(
            zip(out_feature_dict_list, raw_copies), start=1):
        for lvl in range(scale_level):
            scale = 2 ** (lvl + 1)
            key_name = (f'spatialAttn_result_{scale}x' if agent_idx == 1
                        else f'temporalAttn_result_{scale}x')
            got = jax.block_until_ready(fd_out[key_name])
            src = fd_raw[f'proj_align_src_{scale}x']
            ref = jnp.transpose(src.reshape(B, C, -1), (0, 2, 1))
            assert got.shape == ref.shape, (got.shape, ref.shape)
            assert jnp.allclose(got, ref), "mismatch vs reference"
    for v in total_comm_volumes:
        jax.block_until_ready(v)

    print("KERNEL_OK")
</pallas_src>

<mosaic_0001>
module attributes {stable_mosaic.version = 11 : i64} {
  func.func @kernel(%arg0: i32, %arg1: memref<1x128x512xf32, #tpu.memory_space<vmem>>, %arg2: memref<1x128x128xf32, #tpu.memory_space<vmem>>, %arg3: memref<1x128x512xf32, #tpu.memory_space<vmem>>, %arg4: memref<1x128x128xf32, #tpu.memory_space<vmem>>, %arg5: memref<1x512x128xf32, #tpu.memory_space<vmem>>, %arg6: memref<1x128x128xf32, #tpu.memory_space<vmem>>, %arg7: memref<1x512x128xf32, #tpu.memory_space<vmem>>, %arg8: memref<1x128x128xf32, #tpu.memory_space<vmem>>) attributes {dimension_semantics = [#tpu.dimension_semantics<parallel>], iteration_bounds = array<i64: 2>, scalar_prefetch = 0 : i64, scratch_operands = 0 : i64, tpu.core_type = #tpu.core_type<tc>, window_params = [{transform_indices = @transform_0, window_bounds = array<i64: 1, 128, 512>}, {transform_indices = @transform_1, window_bounds = array<i64: 1, 128, 128>}, {transform_indices = @transform_2, window_bounds = array<i64: 1, 128, 512>}, {transform_indices = @transform_3, window_bounds = array<i64: 1, 128, 128>}, {transform_indices = @transform_4, window_bounds = array<i64: 1, 512, 128>}, {transform_indices = @transform_5, window_bounds = array<i64: 1, 128, 128>}, {transform_indices = @transform_6, window_bounds = array<i64: 1, 512, 128>}, {transform_indices = @transform_7, window_bounds = array<i64: 1, 128, 128>}]} {
    %c0 = arith.constant 0 : index
    %c0_0 = arith.constant 0 : index
    %c0_1 = arith.constant 0 : index
    %0 = vector.load %arg1[%c0, %c0_0, %c0_1] : memref<1x128x512xf32, #tpu.memory_space<vmem>>, vector<1x128x512xf32>
    %1 = vector.shape_cast %0 : vector<1x128x512xf32> to vector<128x512xf32>
    %2 = tpu.transpose %1, [1, 0] : vector<128x512xf32> -> vector<512x128xf32>
    %c0_2 = arith.constant 0 : index
    %c0_3 = arith.constant 0 : index
    %c0_4 = arith.constant 0 : index
    %3 = vector.load %arg5[%c0_2, %c0_3, %c0_4] : memref<1x512x128xf32, #tpu.memory_space<vmem>>, vector<1x512x128xf32>
    %4 = vector.shape_cast %3 : vector<1x512x128xf32> to vector<512x128xf32>
    %5 = vector.shape_cast %2 : vector<512x128xf32> to vector<1x512x128xf32>
    tpu.vector_store %arg5[%c0_2, %c0_3, %c0_4], %5 {strides = array<i32>} : memref<1x512x128xf32, #tpu.memory_space<vmem>>, vector<1x512x128xf32>,
    %c0_5 = arith.constant 0 : index
    %c0_6 = arith.constant 0 : index
    %c0_7 = arith.constant 0 : index
    %6 = vector.load %arg2[%c0_5, %c0_6, %c0_7] : memref<1x128x128xf32, #tpu.memory_space<vmem>>, vector<1x128x128xf32>
    %7 = vector.shape_cast %6 : vector<1x128x128xf32> to vector<128x128xf32>
    %8 = tpu.transpose %7, [1, 0] : vector<128x128xf32> -> vector<128x128xf32>
    %c0_8 = arith.constant 0 : index
    %c0_9 = arith.constant 0 : index
    %c0_10 = arith.constant 0 : index
    %9 = vector.load %arg6[%c0_8, %c0_9, %c0_10] : memref<1x128x128xf32, #tpu.memory_space<vmem>>, vector<1x128x128xf32>
    %10 = vector.shape_cast %9 : vector<1x128x128xf32> to vector<128x128xf32>
    %11 = vector.shape_cast %8 : vector<128x128xf32> to vector<1x128x128xf32>
    tpu.vector_store %arg6[%c0_8, %c0_9, %c0_10], %11 {strides = array<i32>} : memref<1x128x128xf32, #tpu.memory_space<vmem>>, vector<1x128x128xf32>,
    %c0_11 = arith.constant 0 : index
    %c0_12 = arith.constant 0 : index
    %c0_13 = arith.constant 0 : index
    %12 = vector.load %arg3[%c0_11, %c0_12, %c0_13] : memref<1x128x512xf32, #tpu.memory_space<vmem>>, vector<1x128x512xf32>
    %13 = vector.shape_cast %12 : vector<1x128x512xf32> to vector<128x512xf32>
    %14 = tpu.transpose %13, [1, 0] : vector<128x512xf32> -> vector<512x128xf32>
    %c0_14 = arith.constant 0 : index
    %c0_15 = arith.constant 0 : index
    %c0_16 = arith.constant 0 : index
    %15 = vector.load %arg7[%c0_14, %c0_15, %c0_16] : memref<1x512x128xf32, #tpu.memory_space<vmem>>, vector<1x512x128xf32>
    %16 = vector.shape_cast %15 : vector<1x512x128xf32> to vector<512x128xf32>
    %17 = vector.shape_cast %14 : vector<512x128xf32> to vector<1x512x128xf32>
    tpu.vector_store %arg7[%c0_14, %c0_15, %c0_16], %17 {strides = array<i32>} : memref<1x512x128xf32, #tpu.memory_space<vmem>>, vector<1x512x128xf32>,
    %c0_17 = arith.constant 0 : index
    %c0_18 = arith.constant 0 : index
    %c0_19 = arith.constant 0 : index
    %18 = vector.load %arg4[%c0_17, %c0_18, %c0_19] : memref<1x128x128xf32, #tpu.memory_space<vmem>>, vector<1x128x128xf32>
    %19 = vector.shape_cast %18 : vector<1x128x128xf32> to vector<128x128xf32>
    %20 = tpu.transpose %19, [1, 0] : vector<128x128xf32> -> vector<128x128xf32>
    %c0_20 = arith.constant 0 : index
    %c0_21 = arith.constant 0 : index
    %c0_22 = arith.constant 0 : index
    %21 = vector.load %arg8[%c0_20, %c0_21, %c0_22] : memref<1x128x128xf32, #tpu.memory_space<vmem>>, vector<1x128x128xf32>
    %22 = vector.shape_cast %21 : vector<1x128x128xf32> to vector<128x128xf32>
    %23 = vector.shape_cast %20 : vector<128x128xf32> to vector<1x128x128xf32>
    tpu.vector_store %arg8[%c0_20, %c0_21, %c0_22], %23 {strides = array<i32>} : memref<1x128x128xf32, #tpu.memory_space<vmem>>, vector<1x128x128xf32>,
    return
  }
  func.func @transform_0(%arg0: i32) -> (i32, i32, i32) {
    %c0_i32 = arith.constant 0 : i32
    %c0_i32_0 = arith.constant 0 : i32
    %c0_i32_1 = arith.constant 0 : i32
    return %arg0, %c0_i32, %c0_i32_0 : i32, i32, i32
  }
  func.func @transform_1(%arg0: i32) -> (i32, i32, i32) {
    %c0_i32 = arith.constant 0 : i32
    %c0_i32_0 = arith.constant 0 : i32
    %c0_i32_1 = arith.constant 0 : i32
    return %arg0, %c0_i32, %c0_i32_0 : i32, i32, i32
  }
  func.func @transform_2(%arg0: i32) -> (i32, i32, i32) {
    %c0_i32 = arith.constant 0 : i32
    %c0_i32_0 = arith.constant 0 : i32
    %c0_i32_1 = arith.constant 0 : i32
    return %arg0, %c0_i32, %c0_i32_0 : i32, i32, i32
  }
  func.func @transform_3(%arg0: i32) -> (i32, i32, i32) {
    %c0_i32 = arith.constant 0 : i32
    %c0_i32_0 = arith.constant 0 : i32
    %c0_i32_1 = arith.constant 0 : i32
    return %arg0, %c0_i32, %c0_i32_0 : i32, i32, i32
  }
  func.func @transform_4(%arg0: i32) -> (i32, i32, i32) {
    %c0_i32 = arith.constant 0 : i32
    %c0_i32_0 = arith.constant 0 : i32
    %c0_i32_1 = arith.constant 0 : i32
    return %arg0, %c0_i32, %c0_i32_0 : i32, i32, i32
  }
  func.func @transform_5(%arg0: i32) -> (i32, i32, i32) {
    %c0_i32 = arith.constant 0 : i32
    %c0_i32_0 = arith.constant 0 : i32
    %c0_i32_1 = arith.constant 0 : i32
    return %arg0, %c0_i32, %c0_i32_0 : i32, i32, i32
  }
  func.func @transform_6(%arg0: i32) -> (i32, i32, i32) {
    %c0_i32 = arith.constant 0 : i32
    %c0_i32_0 = arith.constant 0 : i32
    %c0_i32_1 = arith.constant 0 : i32
    return %arg0, %c0_i32, %c0_i32_0 : i32, i32, i32
  }
  func.func @transform_7(%arg0: i32) -> (i32, i32, i32) {
    %c0_i32 = arith.constant 0 : i32
    %c0_i32_0 = arith.constant 0 : i32
    %c0_i32_1 = arith.constant 0 : i32
    return %arg0, %c0_i32, %c0_i32_0 : i32, i32, i32
  }
}

</mosaic_0001>

<llo_original>
// kernel: tpu_custom_call.1
$region0: #{tpu_custom_call.1}
  #allocation0 [shape = 'u32[]', space=smem, size = 0x4, offset = 0x4, fixed_abs, tag = 'smem constant byte address 0x4 - core index']
  #allocation1 [shape = 'u32[144,128]{1,0:T(1,128)}', space=vmem, size = 0x12000, scoped, tag = 'internal scratch']
  %s0 = inlined_call_operand.hbm [shape: f32[2,128,512], index: 0, kind: input, shape index: {}]
  %s1 = inlined_call_operand.hbm [shape: f32[2,128,128], index: 1, kind: input, shape index: {}]
  %s2 = inlined_call_operand.hbm [shape: f32[2,128,512], index: 2, kind: input, shape index: {}]
  %s3 = inlined_call_operand.hbm [shape: f32[2,128,128], index: 3, kind: input, shape index: {}]
  %s4 = inlined_call_operand.hbm [shape: f32[2,512,128], index: 4, kind: output, shape index: {0}]
  %s5 = inlined_call_operand.hbm [shape: f32[2,128,128], index: 5, kind: output, shape index: {1}]
  %s6 = inlined_call_operand.hbm [shape: f32[2,512,128], index: 6, kind: output, shape index: {2}]
  %s7 = inlined_call_operand.hbm [shape: f32[2,128,128], index: 7, kind: output, shape index: {3}]
  %8 = xla_tuple %s4, %s5, %s6, %s7
  %s9 = sld [smem:[#allocation0]]
  $region89: #{tpu_custom_call.1} parent=0
    _
  %s11 = ssub.s32 1, %s9
  %s12 = scalar_select 0, %s11, %s9
  $region1: #{tpu_custom_call.1} parent=0
    #allocation2 [shape = 'u8[524288]{0}', space=vmem, size = 0x80000, scoped, tag = 'input window, operand 0']
    #allocation3 [shape = 's32[2]{0}', space=sflag, size = 0x8, scoped, tag = 'scoped memory for tpu_custom_call.1']
    #allocation4 [shape = 's32[2]{0}', space=sflag, size = 0x8, scoped, tag = 'scoped memory for tpu_custom_call.1']
    #allocation5 [shape = 'u8[131072]{0}', space=vmem, size = 0x20000, scoped, tag = 'input window, operand 1']
    #allocation6 [shape = 's32[2]{0}', space=sflag, size = 0x8, scoped, tag = 'scoped memory for tpu_custom_call.1']
    #allocation7 [shape = 'u8[524288]{0}', space=vmem, size = 0x80000, scoped, tag = 'input window, operand 2']
    #allocation8 [shape = 'u8[131072]{0}', space=vmem, size = 0x20000, scoped, tag = 'input window, operand 3']
    #allocation9 [shape = 's32[2]{0}', space=sflag, size = 0x8, scoped, tag = 'scoped memory for tpu_custom_call.1']
    #allocation10 [shape = 'u8[524288]{0}', space=vmem, size = 0x80000, scoped, tag = 'output window, operand 0']
    #allocation11 [shape = 'u8[131072]{0}', space=vmem, size = 0x20000, scoped, tag = 'output window, operand 1']
    #allocation12 [shape = 's32[2]{0}', space=sflag, size = 0x8, scoped, tag = 'scoped memory for tpu_custom_call.1']
    #allocation13 [shape = 'u8[524288]{0}', space=vmem, size = 0x80000, scoped, tag = 'output window, operand 2']
    #allocation14 [shape = 'u8[131072]{0}', space=vmem, size = 0x20000, scoped, tag = 'output window, operand 3']
    #allocation15 [shape = 's32[2]{0}', space=sflag, size = 0x8, scoped, tag = 'scoped memory for tpu_custom_call.1']
    %13 = vsyncpa [#allocation3], 0
    %s14 = scalar_lea.sflag [#allocation3], 1
    %15 = vsyncpa %s14, 0
    %16 = vsyncpa [#allocation6], 0
    %s17 = scalar_lea.sflag [#allocation6], 1
    %18 = vsyncpa %s17, 0
    %19 = vsyncpa [#allocation9], 0
    %s20 = scalar_lea.sflag [#allocation9], 1
    %21 = vsyncpa %s20, 0
    %22 = vsyncpa [#allocation4], 0
    %s23 = scalar_lea.sflag [#allocation4], 1
    %24 = vsyncpa %s23, 0
    %25 = vsyncpa [#allocation12], 0
    %s26 = scalar_lea.sflag [#allocation12], 1
    %27 = vsyncpa %s26, 0
    %28 = vsyncpa [#allocation15], 0
    %s29 = scalar_lea.sflag [#allocation15], 1
    %30 = vsyncpa %s29, 0
    loop: start=0, step=1, limit=4
    $region2: #{tpu_custom_call.1} parent=1 // loop_pre_header
      _
    $region3: #{tpu_custom_call.1} parent=1 // loop_header
      %s32 = sphi 0, %s36
      %p33 = scmp.ge.s32.totalorder %s32, 4
      %s42 = sphi 0, %s44
      %s45 = sphi 0, %s42
      %s46 = sphi 0, %s45
      %s62 = sphi 0, %s46
      %s68 = sphi 0, %s70
      %s71 = sphi 0, %s68
      %s72 = sphi 0, %s71
      %s88 = sphi 0, %s72
      %s94 = sphi 0, %s96
      %s97 = sphi 0, %s94
      %s98 = sphi 0, %s97
      %s114 = sphi 0, %s98
      %s120 = sphi 0, %s122
      %s123 = sphi 0, %s120
      %s124 = sphi 0, %s123
      %s140 = sphi 0, %s124
      %s146 = sphi 0, %s148
      %s149 = sphi 0, %s146
      %s150 = sphi 0, %s149
      %s166 = sphi 0, %s150
      %s172 = sphi 0, %s174
      %s175 = sphi 0, %s172
      %s176 = sphi 0, %s175
      %s192 = sphi 0, %s176
      %s198 = sphi 0, %s200
      %s201 = sphi 0, %s198
      %s202 = sphi 0, %s201
      %s218 = sphi 0, %s202
      %s224 = sphi 0, %s226
      %s227 = sphi 0, %s224
      %s228 = sphi 0, %s227
      %s244 = sphi 0, %s228
    $region4: #{tpu_custom_call.1} parent=1 // loop_header_branch
      %35 = sbr.rel (%p33) target = $region8
    $region5: #{tpu_custom_call.1} parent=1 // loop_body
      %s37 = ssub.s32 %s32, 1
      %s38 = ssub.s32 %s32, 2
      %s39 = sadd.s32 %s32, 1
      %s40 = ssub.s32 %s32, %s39
      %p41 = scmp.eq.s32.totalorder %s40, 0
      %s43 = sadd.s32 %s42, 1
      %s44 = scalar_select %p41, %s42, %s43
      %p47 = pneg %p41
      %p48 = scmp.eq.s32.totalorder %s32, 1
      %p49 = por %p47, %p48
      %p50 = scmp.ne.s32.totalorder %s42, %s45
      %p51 = scmp.eq.s32.totalorder %s32, 0
      %p52 = por %p50, %p51
      %p53 = scmp.ne.s32.totalorder %s42, %s45
      %p54 = scmp.eq.s32.totalorder %s37, 1
      %p55 = por %p53, %p54
      %p56 = scmp.ne.s32.totalorder %s45, %s46
      %p57 = scmp.eq.s32.totalorder %s37, 0
      %p58 = por %p56, %p57
      %p59 = scmp.ne.s32.totalorder %s45, %s46
      %p60 = scmp.eq.s32.totalorder %s38, 1
      %p61 = por %p59, %p60
      %p63 = scmp.ne.s32.totalorder %s46, %s62
      %p64 = scmp.eq.s32.totalorder %s38, 0
      %p65 = por %p63, %p64
      %s66 = ssub.s32 %s32, %s39
      %p67 = scmp.eq.s32.totalorder %s66, 0
      %s69 = sadd.s32 %s68, 1
      %s70 = scalar_select %p67, %s68, %s69
      %p73 = pneg %p67
      %p74 = scmp.eq.s32.totalorder %s32, 1
      %p75 = por %p73, %p74
      %p76 = scmp.ne.s32.totalorder %s68, %s71
      %p77 = scmp.eq.s32.totalorder %s32, 0
      %p78 = por %p76, %p77
      %p79 = scmp.ne.s32.totalorder %s68, %s71
      %p80 = scmp.eq.s32.totalorder %s37, 1
      %p81 = por %p79, %p80
      %p82 = scmp.ne.s32.totalorder %s71, %s72
      %p83 = scmp.eq.s32.totalorder %s37, 0
      %p84 = por %p82, %p83
      %p85 = scmp.ne.s32.totalorder %s71, %s72
      %p86 = scmp.eq.s32.totalorder %s38, 1
      %p87 = por %p85, %p86
      %p89 = scmp.ne.s32.totalorder %s72, %s88
      %p90 = scmp.eq.s32.totalorder %s38, 0
      %p91 = por %p89, %p90
      %s92 = ssub.s32 %s32, %s39
      %p93 = scmp.eq.s32.totalorder %s92, 0
      %s95 = sadd.s32 %s94, 1
      %s96 = scalar_select %p93, %s94, %s95
      %p99 = pneg %p93
      %p100 = scmp.eq.s32.totalorder %s32, 1
      %p101 = por %p99, %p100
      %p102 = scmp.ne.s32.totalorder %s94, %s97
      %p103 = scmp.eq.s32.totalorder %s32, 0
      %p104 = por %p102, %p103
      %p105 = scmp.ne.s32.totalorder %s94, %s97
      %p106 = scmp.eq.s32.totalorder %s37, 1
      %p107 = por %p105, %p106
      %p108 = scmp.ne.s32.totalorder %s97, %s98
      %p109 = scmp.eq.s32.totalorder %s37, 0
      %p110 = por %p108, %p109
      %p111 = scmp.ne.s32.totalorder %s97, %s98
      %p112 = scmp.eq.s32.totalorder %s38, 1
      %p113 = por %p111, %p112
      %p115 = scmp.ne.s32.totalorder %s98, %s114
      %p116 = scmp.eq.s32.totalorder %s38, 0
      %p117 = por %p115, %p116
      %s118 = ssub.s32 %s32, %s39
      %p119 = scmp.eq.s32.totalorder %s118, 0
      %s121 = sadd.s32 %s120, 1
      %s122 = scalar_select %p119, %s120, %s121
      %p125 = pneg %p119
      %p126 = scmp.eq.s32.totalorder %s32, 1
      %p127 = por %p125, %p126
      %p128 = scmp.ne.s32.totalorder %s120, %s123
      %p129 = scmp.eq.s32.totalorder %s32, 0
      %p130 = por %p128, %p129
      %p131 = scmp.ne.s32.totalorder %s120, %s123
      %p132 = scmp.eq.s32.totalorder %s37, 1
      %p133 = por %p131, %p132
      %p134 = scmp.ne.s32.totalorder %s123, %s124
      %p135 = scmp.eq.s32.totalorder %s37, 0
      %p136 = por %p134, %p135
      %p137 = scmp.ne.s32.totalorder %s123, %s124
      %p138 = scmp.eq.s32.totalorder %s38, 1
      %p139 = por %p137, %p138
      %p141 = scmp.ne.s32.totalorder %s124, %s140
      %p142 = scmp.eq.s32.totalorder %s38, 0
      %p143 = por %p141, %p142
      %s144 = ssub.s32 %s32, %s39
      %p145 = scmp.eq.s32.totalorder %s144, 0
      %s147 = sadd.s32 %s146, 1
      %s148 = scalar_select %p145, %s146, %s147
      %p151 = pneg %p145
      %p152 = scmp.eq.s32.totalorder %s32, 1
      %p153 = por %p151, %p152
      %p154 = scmp.ne.s32.totalorder %s146, %s149
      %p155 = scmp.eq.s32.totalorder %s32, 0
      %p156 = por %p154, %p155
      %p157 = scmp.ne.s32.totalorder %s146, %s149
      %p158 = scmp.eq.s32.totalorder %s37, 1
      %p159 = por %p157, %p158
      %p160 = scmp.ne.s32.totalorder %s149, %s150
      %p161 = scmp.eq.s32.totalorder %s37, 0
      %p162 = por %p160, %p161
      %p163 = scmp.ne.s32.totalorder %s149, %s150
      %p164 = scmp.eq.s32.totalorder %s38, 1
      %p165 = por %p163, %p164
      %p167 = scmp.ne.s32.totalorder %s150, %s166
      %p168 = scmp.eq.s32.totalorder %s38, 0
      %p169 = por %p167, %p168
      %s170 = ssub.s32 %s32, %s39
      %p171 = scmp.eq.s32.totalorder %s170, 0
      %s173 = sadd.s32 %s172, 1
      %s174 = scalar_select %p171, %s172, %s173
      %p177 = pneg %p171
      %p178 = scmp.eq.s32.totalorder %s32, 1
      %p179 = por %p177, %p178
      %p180 = scmp.ne.s32.totalorder %s172, %s175
      %p181 = scmp.eq.s32.totalorder %s32, 0
      %p182 = por %p180, %p181
      %p183 = scmp.ne.s32.totalorder %s172, %s175
      %p184 = scmp.eq.s32.totalorder %s37, 1
      %p185 = por %p183, %p184
      %p186 = scmp.ne.s32.totalorder %s175, %s176
      %p187 = scmp.eq.s32.totalorder %s37, 0
      %p188 = por %p186, %p187
      %p189 = scmp.ne.s32.totalorder %s175, %s176
      %p190 = scmp.eq.s32.totalorder %s38, 1
      %p191 = por %p189, %p190
      %p193 = scmp.ne.s32.totalorder %s176, %s192
      %p194 = scmp.eq.s32.totalorder %s38, 0
      %p195 = por %p193, %p194
      %s196 = ssub.s32 %s32, %s39
      %p197 = scmp.eq.s32.totalorder %s196, 0
      %s199 = sadd.s32 %s198, 1
      %s200 = scalar_select %p197, %s198, %s199
      %p203 = pneg %p197
      %p204 = scmp.eq.s32.totalorder %s32, 1
      %p205 = por %p203, %p204
      %p206 = scmp.ne.s32.totalorder %s198, %s201
      %p207 = scmp.eq.s32.totalorder %s32, 0
      %p208 = por %p206, %p207
      %p209 = scmp.ne.s32.totalorder %s198, %s201
      %p210 = scmp.eq.s32.totalorder %s37, 1
      %p211 = por %p209, %p210
      %p212 = scmp.ne.s32.totalorder %s201, %s202
      %p213 = scmp.eq.s32.totalorder %s37, 0
      %p214 = por %p212, %p213
      %p215 = scmp.ne.s32.totalorder %s201, %s202
      %p216 = scmp.eq.s32.totalorder %s38, 1
      %p217 = por %p215, %p216
      %p219 = scmp.ne.s32.totalorder %s202, %s218
      %p220 = scmp.eq.s32.totalorder %s38, 0
      %p221 = por %p219, %p220
      %s222 = ssub.s32 %s32, %s39
      %p223 = scmp.eq.s32.totalorder %s222, 0
      %s225 = sadd.s32 %s224, 1
      %s226 = scalar_select %p223, %s224, %s225
      %p229 = pneg %p223
      %p230 = scmp.eq.s32.totalorder %s32, 1
      %p231 = por %p229, %p230
      %p232 = scmp.ne.s32.totalorder %s224, %s227
      %p233 = scmp.eq.s32.totalorder %s32, 0
      %p234 = por %p232, %p233
      %p235 = scmp.ne.s32.totalorder %s224, %s227
      %p236 = scmp.eq.s32.totalorder %s37, 1
      %p237 = por %p235, %p236
      %p238 = scmp.ne.s32.totalorder %s227, %s228
      %p239 = scmp.eq.s32.totalorder %s37, 0
      %p240 = por %p238, %p239
      %p241 = scmp.ne.s32.totalorder %s227, %s228
      %p242 = scmp.eq.s32.totalorder %s38, 1
      %p243 = por %p241, %p242
      %p245 = scmp.ne.s32.totalorder %s228, %s244
      %p246 = scmp.eq.s32.totalorder %s38, 0
      %p247 = por %p245, %p246
      %p248 = scmp.le.s32.totalorder 1, %s32
      %p249 = scmp.lt.s32.totalorder %s32, 3
      %p250 = pnand %p248, %p249
      %p251 = pneg %p250
      // Predicated region
      $region9: #{tpu_custom_call.1} parent=5 // pred_check
        _
      $region10: #{tpu_custom_call.1} parent=5 // pred_check_branch
        %253 = sbr.rel (%p250) target = $region12
      $region11: #{tpu_custom_call.1} parent=5 // pred_region
        %s254 = ssub.s32 %s32, 1
      $region12: #{tpu_custom_call.1} parent=5 // pred_fallthru
        _
      %p255 = scmp.lt.s32.totalorder %s32, 2
      // Predicated region
      $region13: #{tpu_custom_call.1} parent=5 // pred_check
        %p256 = pneg %p255
      $region14: #{tpu_custom_call.1} parent=5 // pred_check_branch
        %258 = sbr.rel (%p256) target = $region16
      $region15: #{tpu_custom_call.1} parent=5 // pred_region
        // Predicated region
        $region17: #{tpu_custom_call.1} parent=15 // pred_check
          %p259 = pneg %p52
        $region18: #{tpu_custom_call.1} parent=15 // pred_check_branch
          %261 = sbr.rel (%p259) target = $region20
        $region19: #{tpu_custom_call.1} parent=15 // pred_region
          %s262 = sand.u32 %s42, 1
          %s263 = scalar_lea.sflag [#allocation3], %s262
          %s264 = sand.u32 %s42, 1
          %s265 = smul.addr %s264, 512
          %s266 = scalar_lea.vmem [#allocation2], %s265
          %s268 = ssub.s32 8192, 8192
          %269 = vsyncadd %s263, %s268
          %s270 = smul.addr %s32, 64
          %s271 = smul.addr %s270, 128
          %s272 = scalar_lea.hbm %s0, %s271
          %s273 = sshll.u32 %s266, 4
          %s274 = int_to_ptr.vmem [resolvable:$true] %s273
          %279 = dma.hbm_to_vmem [thread:$0]  %s272, 8192, %s274, %s263, 512, 512, 32
        $region20: #{tpu_custom_call.1} parent=15 // pred_fallthru
          _
        // Predicated region
        $region21: #{tpu_custom_call.1} parent=15 // pred_check
          %p280 = pneg %p78
        $region22: #{tpu_custom_call.1} parent=15 // pred_check_branch
          %282 = sbr.rel (%p280) target = $region24
        $region23: #{tpu_custom_call.1} parent=15 // pred_region
          %s283 = sand.u32 %s32, 1
          %s284 = scalar_lea.sflag [#allocation6], %s283
          %s285 = sand.u32 %s68, 1
          %s286 = smul.addr %s285, 128
          %s287 = scalar_lea.vmem [#allocation5], %s286
          %s289 = ssub.s32 2048, 2048
          %290 = vsyncadd %s284, %s289
          %s291 = smul.addr %s32, 16
          %s292 = smul.addr %s291, 128
          %s293 = scalar_lea.hbm %s1, %s292
          %s294 = sshll.u32 %s287, 4
          %s295 = int_to_ptr.vmem [resolvable:$true] %s294
          %300 = dma.hbm_to_vmem [thread:$0]  %s293, 2048, %s295, %s284, 128, 128, 8
        $region24: #{tpu_custom_call.1} parent=15 // pred_fallthru
          _
        // Predicated region
        $region25: #{tpu_custom_call.1} parent=15 // pred_check
          %p301 = pneg %p104
        $region26: #{tpu_custom_call.1} parent=15 // pred_check_branch
          %303 = sbr.rel (%p301) target = $region28
        $region27: #{tpu_custom_call.1} parent=15 // pred_region
          %s304 = sand.u32 %s32, 1
          %s305 = scalar_lea.sflag [#allocation6], %s304
          %s306 = sand.u32 %s94, 1
          %s307 = smul.addr %s306, 512
          %s308 = scalar_lea.vmem [#allocation7], %s307
          %s310 = ssub.s32 8192, 8192
          %311 = vsyncadd %s305, %s310
          %s312 = smul.addr %s32, 64
          %s313 = smul.addr %s312, 128
          %s314 = scalar_lea.hbm %s2, %s313
          %s315 = sshll.u32 %s308, 4
          %s316 = int_to_ptr.vmem [resolvable:$true] %s315
          %321 = dma.hbm_to_vmem [thread:$0]  %s314, 8192, %s316, %s305, 512, 512, 32
        $region28: #{tpu_custom_call.1} parent=15 // pred_fallthru
          _
        // Predicated region
        $region29: #{tpu_custom_call.1} parent=15 // pred_check
          %p322 = pneg %p130
        $region30: #{tpu_custom_call.1} parent=15 // pred_check_branch
          %324 = sbr.rel (%p322) target = $region32
        $region31: #{tpu_custom_call.1} parent=15 // pred_region
          %s325 = sand.u32 %s120, 1
          %s326 = scalar_lea.sflag [#allocation9], %s325
          %s327 = sand.u32 %s120, 1
          %s328 = smul.addr %s327, 128
          %s329 = scalar_lea.vmem [#allocation8], %s328
          %s331 = ssub.s32 2048, 2048
          %332 = vsyncadd %s326, %s331
          %s333 = smul.addr %s32, 16
          %s334 = smul.addr %s333, 128
          %s335 = scalar_lea.hbm %s3, %s334
          %s336 = sshll.u32 %s329, 4
          %s337 = int_to_ptr.vmem [resolvable:$true] %s336
          %342 = dma.hbm_to_vmem [thread:$0]  %s335, 2048, %s337, %s326, 128, 128, 8
        $region32: #{tpu_custom_call.1} parent=15 // pred_fallthru
          _
      $region16: #{tpu_custom_call.1} parent=5 // pred_fallthru
        _
      %p343 = scmp.le.s32.totalorder 1, %s32
      %p344 = scmp.lt.s32.totalorder %s32, 3
      %p345 = pnand %p343, %p344
      %p346 = pneg %p345
      // Predicated region
      $region33: #{tpu_custom_call.1} parent=5 // pred_check
        _
      $region34: #{tpu_custom_call.1} parent=5 // pred_check_branch
        %348 = sbr.rel (%p345) target = $region36
      $region35: #{tpu_custom_call.1} parent=5 // pred_region
        %s349 = ssub.s32 %s32, 1
        %s350 = sand.u32 %s45, 1
        %s351 = scalar_lea.sflag [#allocation3], %s350
        %s352 = sand.u32 %s45, 1
        %s353 = smul.addr %s352, 512
        %s354 = scalar_lea.vmem [#allocation2], %s353
        // Predicated region
        $region37: #{tpu_custom_call.1} parent=35 // pred_check
          %p355 = pneg %p58
        $region38: #{tpu_custom_call.1} parent=35 // pred_check_branch
          %357 = sbr.rel (%p355) target = $region40
        $region39: #{tpu_custom_call.1} parent=35 // pred_region
          %358 = dma.done %s351, 8192
        $region40: #{tpu_custom_call.1} parent=35 // pred_fallthru
          _
        %s359 = sand.u32 %s37, 1
        %s360 = scalar_lea.sflag [#allocation6], %s359
        %s361 = sand.u32 %s71, 1
        %s362 = smul.addr %s361, 128
        %s363 = scalar_lea.vmem [#allocation5], %s362
        // Predicated region
        $region41: #{tpu_custom_call.1} parent=35 // pred_check
          %p364 = pneg %p84
        $region42: #{tpu_custom_call.1} parent=35 // pred_check_branch
          %366 = sbr.rel (%p364) target = $region44
        $region43: #{tpu_custom_call.1} parent=35 // pred_region
          %367 = dma.done %s360, 2048
        $region44: #{tpu_custom_call.1} parent=35 // pred_fallthru
          _
        %s368 = sand.u32 %s37, 1
        %s369 = scalar_lea.sflag [#allocation6], %s368
        %s370 = sand.u32 %s97, 1
        %s371 = smul.addr %s370, 512
        %s372 = scalar_lea.vmem [#allocation7], %s371
        // Predicated region
        $region45: #{tpu_custom_call.1} parent=35 // pred_check
          %p373 = pneg %p110
        $region46: #{tpu_custom_call.1} parent=35 // pred_check_branch
          %375 = sbr.rel (%p373) target = $region48
        $region47: #{tpu_custom_call.1} parent=35 // pred_region
          %376 = dma.done %s369, 8192
        $region48: #{tpu_custom_call.1} parent=35 // pred_fallthru
          _
        %s377 = sand.u32 %s123, 1
        %s378 = scalar_lea.sflag [#allocation9], %s377
        %s379 = sand.u32 %s123, 1
        %s380 = smul.addr %s379, 128
        %s381 = scalar_lea.vmem [#allocation8], %s380
        // Predicated region
        $region49: #{tpu_custom_call.1} parent=35 // pred_check
          %p382 = pneg %p136
        $region50: #{tpu_custom_call.1} parent=35 // pred_check_branch
          %384 = sbr.rel (%p382) target = $region52
        $region51: #{tpu_custom_call.1} parent=35 // pred_region
          %385 = dma.done %s378, 2048
        $region52: #{tpu_custom_call.1} parent=35 // pred_fallthru
          _
        %s386 = sand.u32 %s45, 1
        %s387 = scalar_lea.sflag [#allocation3], %s386
        %s388 = sand.u32 %s45, 1
        %s389 = smul.addr %s388, 512
        %s390 = scalar_lea.vmem [#allocation2], %s389
        %p391 = pneg %p58
        %p392 = pneg %p55
        %s393 = sand.u32 %s37, 1
        %s394 = scalar_lea.sflag [#allocation6], %s393
        %s395 = sand.u32 %s71, 1
        %s396 = smul.addr %s395, 128
        %s397 = scalar_lea.vmem [#allocation5], %s396
        %p398 = pneg %p84
        %p399 = pneg %p81
        %s400 = sand.u32 %s37, 1
        %s401 = scalar_lea.sflag [#allocation6], %s400
        %s402 = sand.u32 %s97, 1
        %s403 = smul.addr %s402, 512
        %s404 = scalar_lea.vmem [#allocation7], %s403
        %p405 = pneg %p110
        %p406 = pneg %p107
        %s407 = sand.u32 %s123, 1
        %s408 = scalar_lea.sflag [#allocation9], %s407
        %s409 = sand.u32 %s123, 1
        %s410 = smul.addr %s409, 128
        %s411 = scalar_lea.vmem [#allocation8], %s410
        %p412 = pneg %p136
        %p413 = pneg %p133
        %p414 = pneg %p162
        %p415 = pneg %p159
        %s416 = sand.u32 %s149, 1
        %s417 = scalar_lea.sflag [#allocation4], %s416
        %s418 = sand.u32 %s149, 1
        %s419 = smul.addr %s418, 512
        %s420 = scalar_lea.vmem [#allocation10], %s419
        %p421 = pneg %p188
        %p422 = pneg %p185
        %s423 = sand.u32 %s37, 1
        %s424 = scalar_lea.sflag [#allocation12], %s423
        %s425 = sand.u32 %s175, 1
        %s426 = smul.addr %s425, 128
        %s427 = scalar_lea.vmem [#allocation11], %s426
        %p428 = pneg %p214
        %p429 = pneg %p211
        %s430 = sand.u32 %s37, 1
        %s431 = scalar_lea.sflag [#allocation12], %s430
        %s432 = sand.u32 %s201, 1
        %s433 = smul.addr %s432, 512
        %s434 = scalar_lea.vmem [#allocation13], %s433
        %p435 = pneg %p240
        %p436 = pneg %p237
        %s437 = sand.u32 %s227, 1
        %s438 = scalar_lea.sflag [#allocation15], %s437
        %s439 = sand.u32 %s227, 1
        %s440 = smul.addr %s439, 128
        %s441 = scalar_lea.vmem [#allocation14], %s440
        %v442 = vld [vmem:[%s354] sm:$0xff]
        %v443 = vld [vmem:[%s354 + $0x8] sm:$0xff]
        %v444 = vld [vmem:[%s354 + $0x10] sm:$0xff]
        %v445 = vld [vmem:[%s354 + $0x18] sm:$0xff]
        %v446 = vld [vmem:[%s354 + $0x20] sm:$0xff]
        %v447 = vld [vmem:[%s354 + $0x28] sm:$0xff]
        %v448 = vld [vmem:[%s354 + $0x30] sm:$0xff]
        %v449 = vld [vmem:[%s354 + $0x38] sm:$0xff]
        %v450 = vld [vmem:[%s354 + $0x40] sm:$0xff]
        %v451 = vld [vmem:[%s354 + $0x48] sm:$0xff]
        %v452 = vld [vmem:[%s354 + $0x50] sm:$0xff]
        %v453 = vld [vmem:[%s354 + $0x58] sm:$0xff]
        %v454 = vld [vmem:[%s354 + $0x60] sm:$0xff]
        %v455 = vld [vmem:[%s354 + $0x68] sm:$0xff]
        %v456 = vld [vmem:[%s354 + $0x70] sm:$0xff]
        %v457 = vld [vmem:[%s354 + $0x78] sm:$0xff]
        %v458 = vld [vmem:[%s354 + $0x80] sm:$0xff]
        %v459 = vld [vmem:[%s354 + $0x88] sm:$0xff]
        %v460 = vld [vmem:[%s354 + $0x90] sm:$0xff]
        %v461 = vld [vmem:[%s354 + $0x98] sm:$0xff]
        %v462 = vld [vmem:[%s354 + $0xa0] sm:$0xff]
        %v463 = vld [vmem:[%s354 + $0xa8] sm:$0xff]
        %v464 = vld [vmem:[%s354 + $0xb0] sm:$0xff]
        %v465 = vld [vmem:[%s354 + $0xb8] sm:$0xff]
        %v466 = vld [vmem:[%s354 + $0xc0] sm:$0xff]
        %v467 = vld [vmem:[%s354 + $0xc8] sm:$0xff]
        %v468 = vld [vmem:[%s354 + $0xd0] sm:$0xff]
        %v469 = vld [vmem:[%s354 + $0xd8] sm:$0xff]
        %v470 = vld [vmem:[%s354 + $0xe0] sm:$0xff]
        %v471 = vld [vmem:[%s354 + $0xe8] sm:$0xff]
        %v472 = vld [vmem:[%s354 + $0xf0] sm:$0xff]
        %v473 = vld [vmem:[%s354 + $0xf8] sm:$0xff]
        %v474 = vld [vmem:[%s354 + $0x100] sm:$0xff]
        %v475 = vld [vmem:[%s354 + $0x108] sm:$0xff]
        %v476 = vld [vmem:[%s354 + $0x110] sm:$0xff]
        %v477 = vld [vmem:[%s354 + $0x118] sm:$0xff]
        %v478 = vld [vmem:[%s354 + $0x120] sm:$0xff]
        %v479 = vld [vmem:[%s354 + $0x128] sm:$0xff]
        %v480 = vld [vmem:[%s354 + $0x130] sm:$0xff]
        %v481 = vld [vmem:[%s354 + $0x138] sm:$0xff]
        %v482 = vld [vmem:[%s354 + $0x140] sm:$0xff]
        %v483 = vld [vmem:[%s354 + $0x148] sm:$0xff]
        %v484 = vld [vmem:[%s354 + $0x150] sm:$0xff]
        %v485 = vld [vmem:[%s354 + $0x158] sm:$0xff]
        %v486 = vld [vmem:[%s354 + $0x160] sm:$0xff]
        %v487 = vld [vmem:[%s354 + $0x168] sm:$0xff]
        %v488 = vld [vmem:[%s354 + $0x170] sm:$0xff]
        %v489 = vld [vmem:[%s354 + $0x178] sm:$0xff]
        %v490 = vld [vmem:[%s354 + $0x180] sm:$0xff]
        %v491 = vld [vmem:[%s354 + $0x188] sm:$0xff]
        %v492 = vld [vmem:[%s354 + $0x190] sm:$0xff]
        %v493 = vld [vmem:[%s354 + $0x198] sm:$0xff]
        %v494 = vld [vmem:[%s354 + $0x1a0] sm:$0xff]
        %v495 = vld [vmem:[%s354 + $0x1a8] sm:$0xff]
        %v496 = vld [vmem:[%s354 + $0x1b0] sm:$0xff]
        %v497 = vld [vmem:[%s354 + $0x1b8] sm:$0xff]
        %v498 = vld [vmem:[%s354 + $0x1c0] sm:$0xff]
        %v499 = vld [vmem:[%s354 + $0x1c8] sm:$0xff]
        %v500 = vld [vmem:[%s354 + $0x1d0] sm:$0xff]
        %v501 = vld [vmem:[%s354 + $0x1d8] sm:$0xff]
        %v502 = vld [vmem:[%s354 + $0x1e0] sm:$0xff]
        %v503 = vld [vmem:[%s354 + $0x1e8] sm:$0xff]
        %v504 = vld [vmem:[%s354 + $0x1f0] sm:$0xff]
        %v505 = vld [vmem:[%s354 + $0x1f8] sm:$0xff]
        %506 = vxpose.xlu0.b32.start [1/16] %v442, 128
        %507 = vxpose.xlu0.b32.cont [2/16] %v446, 128
        %508 = vxpose.xlu0.b32.cont [3/16] %v450, 128
        %509 = vxpose.xlu0.b32.cont [4/16] %v454, 128
        %510 = vxpose.xlu0.b32.cont [5/16] %v458, 128
        %511 = vxpose.xlu0.b32.cont [6/16] %v462, 128
        %512 = vxpose.xlu0.b32.cont [7/16] %v466, 128
        %513 = vxpose.xlu0.b32.cont [8/16] %v470, 128
        %514 = vxpose.xlu0.b32.cont [9/16] %v474, 128
        %515 = vxpose.xlu0.b32.cont [10/16] %v478, 128
        %516 = vxpose.xlu0.b32.cont [11/16] %v482, 128
        %517 = vxpose.xlu0.b32.cont [12/16] %v486, 128
        %518 = vxpose.xlu0.b32.cont [13/16] %v490, 128
        %519 = vxpose.xlu0.b32.cont [14/16] %v494, 128
        %520 = vxpose.xlu0.b32.cont [15/16] %v498, 128
        %521 = vxpose.xlu0.b32.end [16/16] %v502, 128
        %v522 = vpop.trf.xlu0
        %v523 = vpop.trf.xlu0
        %v524 = vpop.trf.xlu0
        %v525 = vpop.trf.xlu0
        %v526 = vpop.trf.xlu0
        %v527 = vpop.trf.xlu0
        %v528 = vpop.trf.xlu0
        %v529 = vpop.trf.xlu0
        %v530 = vpop.trf.xlu0
        %v531 = vpop.trf.xlu0
        %v532 = vpop.trf.xlu0
        %v533 = vpop.trf.xlu0
        %v534 = vpop.trf.xlu0
        %v535 = vpop.trf.xlu0
        %v536 = vpop.trf.xlu0
        %v537 = vpop.trf.xlu0
        %538 = vxpose.xlu0.b32.start [1/16] %v443, 128
        %539 = vxpose.xlu0.b32.cont [2/16] %v447, 128
        %540 = vxpose.xlu0.b32.cont [3/16] %v451, 128
        %541 = vxpose.xlu0.b32.cont [4/16] %v455, 128
        %542 = vxpose.xlu0.b32.cont [5/16] %v459, 128
        %543 = vxpose.xlu0.b32.cont [6/16] %v463, 128
        %544 = vxpose.xlu0.b32.cont [7/16] %v467, 128
        %545 = vxpose.xlu0.b32.cont [8/16] %v471, 128
        %546 = vxpose.xlu0.b32.cont [9/16] %v475, 128
        %547 = vxpose.xlu0.b32.cont [10/16] %v479, 128
        %548 = vxpose.xlu0.b32.cont [11/16] %v483, 128
        %549 = vxpose.xlu0.b32.cont [12/16] %v487, 128
        %550 = vxpose.xlu0.b32.cont [13/16] %v491, 128
        %551 = vxpose.xlu0.b32.cont [14/16] %v495, 128
        %552 = vxpose.xlu0.b32.cont [15/16] %v499, 128
        %553 = vxpose.xlu0.b32.end [16/16] %v503, 128
        %v554 = vpop.trf.xlu0
        %v555 = vpop.trf.xlu0
        %v556 = vpop.trf.xlu0
        %v557 = vpop.trf.xlu0
        %v558 = vpop.trf.xlu0
        %v559 = vpop.trf.xlu0
        %v560 = vpop.trf.xlu0
        %v561 = vpop.trf.xlu0
        %v562 = vpop.trf.xlu0
        %v563 = vpop.trf.xlu0
        %v564 = vpop.trf.xlu0
        %v565 = vpop.trf.xlu0
        %v566 = vpop.trf.xlu0
        %v567 = vpop.trf.xlu0
        %v568 = vpop.trf.xlu0
        %v569 = vpop.trf.xlu0
        %570 = vxpose.xlu0.b32.start [1/16] %v444, 128
        %571 = vxpose.xlu0.b32.cont [2/16] %v448, 128
        %572 = vxpose.xlu0.b32.cont [3/16] %v452, 128
        %573 = vxpose.xlu0.b32.cont [4/16] %v456, 128
        %574 = vxpose.xlu0.b32.cont [5/16] %v460, 128
        %575 = vxpose.xlu0.b32.cont [6/16] %v464, 128
        %576 = vxpose.xlu0.b32.cont [7/16] %v468, 128
        %577 = vxpose.xlu0.b32.cont [8/16] %v472, 128
        %578 = vxpose.xlu0.b32.cont [9/16] %v476, 128
        %579 = vxpose.xlu0.b32.cont [10/16] %v480, 128
        %580 = vxpose.xlu0.b32.cont [11/16] %v484, 128
        %581 = vxpose.xlu0.b32.cont [12/16] %v488, 128
        %582 = vxpose.xlu0.b32.cont [13/16] %v492, 128
        %583 = vxpose.xlu0.b32.cont [14/16] %v496, 128
        %584 = vxpose.xlu0.b32.cont [15/16] %v500, 128
        %585 = vxpose.xlu0.b32.end [16/16] %v504, 128
        %v586 = vpop.trf.xlu0
        %v587 = vpop.trf.xlu0
        %v588 = vpop.trf.xlu0
        %v589 = vpop.trf.xlu0
        %v590 = vpop.trf.xlu0
        %v591 = vpop.trf.xlu0
        %v592 = vpop.trf.xlu0
        %v593 = vpop.trf.xlu0
        %v594 = vpop.trf.xlu0
        %v595 = vpop.trf.xlu0
        %v596 = vpop.trf.xlu0
        %v597 = vpop.trf.xlu0
        %v598 = vpop.trf.xlu0
        %v599 = vpop.trf.xlu0
        %v600 = vpop.trf.xlu0
        %v601 = vpop.trf.xlu0
        %602 = vxpose.xlu0.b32.start [1/16] %v445, 128
        %603 = vxpose.xlu0.b32.cont [2/16] %v449, 128
        %604 = vxpose.xlu0.b32.cont [3/16] %v453, 128
        %605 = vxpose.xlu0.b32.cont [4/16] %v457, 128
        %606 = vxpose.xlu0.b32.cont [5/16] %v461, 128
        %607 = vxpose.xlu0.b32.cont [6/16] %v465, 128
        %608 = vxpose.xlu0.b32.cont [7/16] %v469, 128
        %609 = vxpose.xlu0.b32.cont [8/16] %v473, 128
        %610 = vxpose.xlu0.b32.cont [9/16] %v477, 128
        %611 = vxpose.xlu0.b32.cont [10/16] %v481, 128
        %612 = vxpose.xlu0.b32.cont [11/16] %v485, 128
        %613 = vxpose.xlu0.b32.cont [12/16] %v489, 128
        %614 = vxpose.xlu0.b32.cont [13/16] %v493, 128
        %615 = vxpose.xlu0.b32.cont [14/16] %v497, 128
        %616 = vxpose.xlu0.b32.cont [15/16] %v501, 128
        %617 = vxpose.xlu0.b32.end [16/16] %v505, 128
        %v618 = vpop.trf.xlu0
        %v619 = vpop.trf.xlu0
        %v620 = vpop.trf.xlu0
        %v621 = vpop.trf.xlu0
        %v622 = vpop.trf.xlu0
        %v623 = vpop.trf.xlu0
        %v624 = vpop.trf.xlu0
        %v625 = vpop.trf.xlu0
        %v626 = vpop.trf.xlu0
        %v627 = vpop.trf.xlu0
        %v628 = vpop.trf.xlu0
        %v629 = vpop.trf.xlu0
        %v630 = vpop.trf.xlu0
        %v631 = vpop.trf.xlu0
        %v632 = vpop.trf.xlu0
        %v633 = vpop.trf.xlu0
        %634 = vst [vmem:[%s420] sm:$0xff] %v522
        %635 = vst [vmem:[%s420 + $0x8] sm:$0xff] %v523
        %636 = vst [vmem:[%s420 + $0x10] sm:$0xff] %v524
        %637 = vst [vmem:[%s420 + $0x18] sm:$0xff] %v525
        %638 = vst [vmem:[%s420 + $0x20] sm:$0xff] %v526
        %639 = vst [vmem:[%s420 + $0x28] sm:$0xff] %v527
        %640 = vst [vmem:[%s420 + $0x30] sm:$0xff] %v528
        %641 = vst [vmem:[%s420 + $0x38] sm:$0xff] %v529
        %642 = vst [vmem:[%s420 + $0x40] sm:$0xff] %v530
        %643 = vst [vmem:[%s420 + $0x48] sm:$0xff] %v531
        %644 = vst [vmem:[%s420 + $0x50] sm:$0xff] %v532
        %645 = vst [vmem:[%s420 + $0x58] sm:$0xff] %v533
        %646 = vst [vmem:[%s420 + $0x60] sm:$0xff] %v534
        %647 = vst [vmem:[%s420 + $0x68] sm:$0xff] %v535
        %648 = vst [vmem:[%s420 + $0x70] sm:$0xff] %v536
        %649 = vst [vmem:[%s420 + $0x78] sm:$0xff] %v537
        %650 = vst [vmem:[%s420 + $0x80] sm:$0xff] %v554
        %651 = vst [vmem:[%s420 + $0x88] sm:$0xff] %v555
        %652 = vst [vmem:[%s420 + $0x90] sm:$0xff] %v556
        %653 = vst [vmem:[%s420 + $0x98] sm:$0xff] %v557
        %654 = vst [vmem:[%s420 + $0xa0] sm:$0xff] %v558
        %655 = vst [vmem:[%s420 + $0xa8] sm:$0xff] %v559
        %656 = vst [vmem:[%s420 + $0xb0] sm:$0xff] %v560
        %657 = vst [vmem:[%s420 + $0xb8] sm:$0xff] %v561
        %658 = vst [vmem:[%s420 + $0xc0] sm:$0xff] %v562
        %659 = vst [vmem:[%s420 + $0xc8] sm:$0xff] %v563
        %660 = vst [vmem:[%s420 + $0xd0] sm:$0xff] %v564
        %661 = vst [vmem:[%s420 + $0xd8] sm:$0xff] %v565
        %662 = vst [vmem:[%s420 + $0xe0] sm:$0xff] %v566
        %663 = vst [vmem:[%s420 + $0xe8] sm:$0xff] %v567
        %664 = vst [vmem:[%s420 + $0xf0] sm:$0xff] %v568
        %665 = vst [vmem:[%s420 + $0xf8] sm:$0xff] %v569
        %666 = vst [vmem:[%s420 + $0x100] sm:$0xff] %v586
        %667 = vst [vmem:[%s420 + $0x108] sm:$0xff] %v587
        %668 = vst [vmem:[%s420 + $0x110] sm:$0xff] %v588
        %669 = vst [vmem:[%s420 + $0x118] sm:$0xff] %v589
        %670 = vst [vmem:[%s420 + $0x120] sm:$0xff] %v590
        %671 = vst [vmem:[%s420 + $0x128] sm:$0xff] %v591
        %672 = vst [vmem:[%s420 + $0x130] sm:$0xff] %v592
        %673 = vst [vmem:[%s420 + $0x138] sm:$0xff] %v593
        %674 = vst [vmem:[%s420 + $0x140] sm:$0xff] %v594
        %675 = vst [vmem:[%s420 + $0x148] sm:$0xff] %v595
        %676 = vst [vmem:[%s420 + $0x150] sm:$0xff] %v596
        %677 = vst [vmem:[%s420 + $0x158] sm:$0xff] %v597
        %678 = vst [vmem:[%s420 + $0x160] sm:$0xff] %v598
        %679 = vst [vmem:[%s420 + $0x168] sm:$0xff] %v599
        %680 = vst [vmem:[%s420 + $0x170] sm:$0xff] %v600
        %681 = vst [vmem:[%s420 + $0x178] sm:$0xff] %v601
        %682 = vst [vmem:[%s420 + $0x180] sm:$0xff] %v618
        %683 = vst [vmem:[%s420 + $0x188] sm:$0xff] %v619
        %684 = vst [vmem:[%s420 + $0x190] sm:$0xff] %v620
        %685 = vst [vmem:[%s420 + $0x198] sm:$0xff] %v621
        %686 = vst [vmem:[%s420 + $0x1a0] sm:$0xff] %v622
        %687 = vst [vmem:[%s420 + $0x1a8] sm:$0xff] %v623
        %688 = vst [vmem:[%s420 + $0x1b0] sm:$0xff] %v624
        %689 = vst [vmem:[%s420 + $0x1b8] sm:$0xff] %v625
        %690 = vst [vmem:[%s420 + $0x1c0] sm:$0xff] %v626
        %691 = vst [vmem:[%s420 + $0x1c8] sm:$0xff] %v627
        %692 = vst [vmem:[%s420 + $0x1d0] sm:$0xff] %v628
        %693 = vst [vmem:[%s420 + $0x1d8] sm:$0xff] %v629
        %694 = vst [vmem:[%s420 + $0x1e0] sm:$0xff] %v630
        %695 = vst [vmem:[%s420 + $0x1e8] sm:$0xff] %v631
        %696 = vst [vmem:[%s420 + $0x1f0] sm:$0xff] %v632
        %697 = vst [vmem:[%s420 + $0x1f8] sm:$0xff] %v633
        %v698 = vld [vmem:[%s363] sm:$0xff]
        %v699 = vld [vmem:[%s363 + $0x8] sm:$0xff]
        %v700 = vld [vmem:[%s363 + $0x10] sm:$0xff]
        %v701 = vld [vmem:[%s363 + $0x18] sm:$0xff]
        %v702 = vld [vmem:[%s363 + $0x20] sm:$0xff]
        %v703 = vld [vmem:[%s363 + $0x28] sm:$0xff]
        %v704 = vld [vmem:[%s363 + $0x30] sm:$0xff]
        %v705 = vld [vmem:[%s363 + $0x38] sm:$0xff]
        %v706 = vld [vmem:[%s363 + $0x40] sm:$0xff]
        %v707 = vld [vmem:[%s363 + $0x48] sm:$0xff]
        %v708 = vld [vmem:[%s363 + $0x50] sm:$0xff]
        %v709 = vld [vmem:[%s363 + $0x58] sm:$0xff]
        %v710 = vld [vmem:[%s363 + $0x60] sm:$0xff]
        %v711 = vld [vmem:[%s363 + $0x68] sm:$0xff]
        %v712 = vld [vmem:[%s363 + $0x70] sm:$0xff]
        %v713 = vld [vmem:[%s363 + $0x78] sm:$0xff]
        %714 = vxpose.xlu0.b32.start [1/16] %v698, 128
        %715 = vxpose.xlu0.b32.cont [2/16] %v699, 128
        %716 = vxpose.xlu0.b32.cont [3/16] %v700, 128
        %717 = vxpose.xlu0.b32.cont [4/16] %v701, 128
        %718 = vxpose.xlu0.b32.cont [5/16] %v702, 128
        %719 = vxpose.xlu0.b32.cont [6/16] %v703, 128
        %720 = vxpose.xlu0.b32.cont [7/16] %v704, 128
        %721 = vxpose.xlu0.b32.cont [8/16] %v705, 128
        %722 = vxpose.xlu0.b32.cont [9/16] %v706, 128
        %723 = vxpose.xlu0.b32.cont [10/16] %v707, 128
        %724 = vxpose.xlu0.b32.cont [11/16] %v708, 128
        %725 = vxpose.xlu0.b32.cont [12/16] %v709, 128
        %726 = vxpose.xlu0.b32.cont [13/16] %v710, 128
        %727 = vxpose.xlu0.b32.cont [14/16] %v711, 128
        %728 = vxpose.xlu0.b32.cont [15/16] %v712, 128
        %729 = vxpose.xlu0.b32.end [16/16] %v713, 128
        %v730 = vpop.trf.xlu0
        %v731 = vpop.trf.xlu0
        %v732 = vpop.trf.xlu0
        %v733 = vpop.trf.xlu0
        %v734 = vpop.trf.xlu0
        %v735 = vpop.trf.xlu0
        %v736 = vpop.trf.xlu0
        %v737 = vpop.trf.xlu0
        %v738 = vpop.trf.xlu0
        %v739 = vpop.trf.xlu0
        %v740 = vpop.trf.xlu0
        %v741 = vpop.trf.xlu0
        %v742 = vpop.trf.xlu0
        %v743 = vpop.trf.xlu0
        %v744 = vpop.trf.xlu0
        %v745 = vpop.trf.xlu0
        %746 = vst [vmem:[%s427] sm:$0xff] %v730
        %747 = vst [vmem:[%s427 + $0x8] sm:$0xff] %v731
        %748 = vst [vmem:[%s427 + $0x10] sm:$0xff] %v732
        %749 = vst [vmem:[%s427 + $0x18] sm:$0xff] %v733
        %750 = vst [vmem:[%s427 + $0x20] sm:$0xff] %v734
        %751 = vst [vmem:[%s427 + $0x28] sm:$0xff] %v735
        %752 = vst [vmem:[%s427 + $0x30] sm:$0xff] %v736
        %753 = vst [vmem:[%s427 + $0x38] sm:$0xff] %v737
        %754 = vst [vmem:[%s427 + $0x40] sm:$0xff] %v738
        %755 = vst [vmem:[%s427 + $0x48] sm:$0xff] %v739
        %756 = vst [vmem:[%s427 + $0x50] sm:$0xff] %v740
        %757 = vst [vmem:[%s427 + $0x58] sm:$0xff] %v741
        %758 = vst [vmem:[%s427 + $0x60] sm:$0xff] %v742
        %759 = vst [vmem:[%s427 + $0x68] sm:$0xff] %v743
        %760 = vst [vmem:[%s427 + $0x70] sm:$0xff] %v744
        %761 = vst [vmem:[%s427 + $0x78] sm:$0xff] %v745
        %v762 = vld [vmem:[%s372] sm:$0xff]
        %v763 = vld [vmem:[%s372 + $0x8] sm:$0xff]
        %v764 = vld [vmem:[%s372 + $0x10] sm:$0xff]
        %v765 = vld [vmem:[%s372 + $0x18] sm:$0xff]
        %v766 = vld [vmem:[%s372 + $0x20] sm:$0xff]
        %v767 = vld [vmem:[%s372 + $0x28] sm:$0xff]
        %v768 = vld [vmem:[%s372 + $0x30] sm:$0xff]
        %v769 = vld [vmem:[%s372 + $0x38] sm:$0xff]
        %v770 = vld [vmem:[%s372 + $0x40] sm:$0xff]
        %v771 = vld [vmem:[%s372 + $0x48] sm:$0xff]
        %v772 = vld [vmem:[%s372 + $0x50] sm:$0xff]
        %v773 = vld [vmem:[%s372 + $0x58] sm:$0xff]
        %v774 = vld [vmem:[%s372 + $0x60] sm:$0xff]
        %v775 = vld [vmem:[%s372 + $0x68] sm:$0xff]
        %v776 = vld [vmem:[%s372 + $0x70] sm:$0xff]
        %v777 = vld [vmem:[%s372 + $0x78] sm:$0xff]
        %v778 = vld [vmem:[%s372 + $0x80] sm:$0xff]
        %v779 = vld [vmem:[%s372 + $0x88] sm:$0xff]
        %v780 = vld [vmem:[%s372 + $0x90] sm:$0xff]
        %v781 = vld [vmem:[%s372 + $0x98] sm:$0xff]
        %v782 = vld [vmem:[%s372 + $0xa0] sm:$0xff]
        %v783 = vld [vmem:[%s372 + $0xa8] sm:$0xff]
        %v784 = vld [vmem:[%s372 + $0xb0] sm:$0xff]
        %v785 = vld [vmem:[%s372 + $0xb8] sm:$0xff]
        %v786 = vld [vmem:[%s372 + $0xc0] sm:$0xff]
        %v787 = vld [vmem:[%s372 + $0xc8] sm:$0xff]
        %v788 = vld [vmem:[%s372 + $0xd0] sm:$0xff]
        %v789 = vld [vmem:[%s372 + $0xd8] sm:$0xff]
        %v790 = vld [vmem:[%s372 + $0xe0] sm:$0xff]
        %v791 = vld [vmem:[%s372 + $0xe8] sm:$0xff]
        %v792 = vld [vmem:[%s372 + $0xf0] sm:$0xff]
        %v793 = vld [vmem:[%s372 + $0xf8] sm:$0xff]
        %v794 = vld [vmem:[%s372 + $0x100] sm:$0xff]
        %v795 = vld [vmem:[%s372 + $0x108] sm:$0xff]
        %v796 = vld [vmem:[%s372 + $0x110] sm:$0xff]
        %v797 = vld [vmem:[%s372 + $0x118] sm:$0xff]
        %v798 = vld [vmem:[%s372 + $0x120] sm:$0xff]
        %v799 = vld [vmem:[%s372 + $0x128] sm:$0xff]
        %v800 = vld [vmem:[%s372 + $0x130] sm:$0xff]
        %v801 = vld [vmem:[%s372 + $0x138] sm:$0xff]
        %v802 = vld [vmem:[%s372 + $0x140] sm:$0xff]
        %v803 = vld [vmem:[%s372 + $0x148] sm:$0xff]
        %v804 = vld [vmem:[%s372 + $0x150] sm:$0xff]
        %v805 = vld [vmem:[%s372 + $0x158] sm:$0xff]
        %v806 = vld [vmem:[%s372 + $0x160] sm:$0xff]
        %v807 = vld [vmem:[%s372 + $0x168] sm:$0xff]
        %v808 = vld [vmem:[%s372 + $0x170] sm:$0xff]
        %v809 = vld [vmem:[%s372 + $0x178] sm:$0xff]
        %v810 = vld [vmem:[%s372 + $0x180] sm:$0xff]
        %v811 = vld [vmem:[%s372 + $0x188] sm:$0xff]
        %v812 = vld [vmem:[%s372 + $0x190] sm:$0xff]
        %v813 = vld [vmem:[%s372 + $0x198] sm:$0xff]
        %v814 = vld [vmem:[%s372 + $0x1a0] sm:$0xff]
        %v815 = vld [vmem:[%s372 + $0x1a8] sm:$0xff]
        %v816 = vld [vmem:[%s372 + $0x1b0] sm:$0xff]
        %v817 = vld [vmem:[%s372 + $0x1b8] sm:$0xff]
        %v818 = vld [vmem:[%s372 + $0x1c0] sm:$0xff]
        %v819 = vld [vmem:[%s372 + $0x1c8] sm:$0xff]
        %v820 = vld [vmem:[%s372 + $0x1d0] sm:$0xff]
        %v821 = vld [vmem:[%s372 + $0x1d8] sm:$0xff]
        %v822 = vld [vmem:[%s372 + $0x1e0] sm:$0xff]
        %v823 = vld [vmem:[%s372 + $0x1e8] sm:$0xff]
        %v824 = vld [vmem:[%s372 + $0x1f0] sm:$0xff]
        %v825 = vld [vmem:[%s372 + $0x1f8] sm:$0xff]
        %826 = vxpose.xlu0.b32.start [1/16] %v762, 128
        %827 = vxpose.xlu0.b32.cont [2/16] %v766, 128
        %828 = vxpose.xlu0.b32.cont [3/16] %v770, 128
        %829 = vxpose.xlu0.b32.cont [4/16] %v774, 128
        %830 = vxpose.xlu0.b32.cont [5/16] %v778, 128
        %831 = vxpose.xlu0.b32.cont [6/16] %v782, 128
        %832 = vxpose.xlu0.b32.cont [7/16] %v786, 128
        %833 = vxpose.xlu0.b32.cont [8/16] %v790, 128
        %834 = vxpose.xlu0.b32.cont [9/16] %v794, 128
        %835 = vxpose.xlu0.b32.cont [10/16] %v798, 128
        %836 = vxpose.xlu0.b32.cont [11/16] %v802, 128
        %837 = vxpose.xlu0.b32.cont [12/16] %v806, 128
        %838 = vxpose.xlu0.b32.cont [13/16] %v810, 128
        %839 = vxpose.xlu0.b32.cont [14/16] %v814, 128
        %840 = vxpose.xlu0.b32.cont [15/16] %v818, 128
        %841 = vxpose.xlu0.b32.end [16/16] %v822, 128
        %v842 = vpop.trf.xlu0
        %v843 = vpop.trf.xlu0
        %v844 = vpop.trf.xlu0
        %v845 = vpop.trf.xlu0
        %v846 = vpop.trf.xlu0
        %v847 = vpop.trf.xlu0
        %v848 = vpop.trf.xlu0
        %v849 = vpop.trf.xlu0
        %v850 = vpop.trf.xlu0
        %v851 = vpop.trf.xlu0
        %v852 = vpop.trf.xlu0
        %v853 = vpop.trf.xlu0
        %v854 = vpop.trf.xlu0
        %v855 = vpop.trf.xlu0
        %v856 = vpop.trf.xlu0
        %v857 = vpop.trf.xlu0
        %858 = vxpose.xlu0.b32.start [1/16] %v763, 128
        %859 = vxpose.xlu0.b32.cont [2/16] %v767, 128
        %860 = vxpose.xlu0.b32.cont [3/16] %v771, 128
        %861 = vxpose.xlu0.b32.cont [4/16] %v775, 128
        %862 = vxpose.xlu0.b32.cont [5/16] %v779, 128
        %863 = vxpose.xlu0.b32.cont [6/16] %v783, 128
        %864 = vxpose.xlu0.b32.cont [7/16] %v787, 128
        %865 = vxpose.xlu0.b32.cont [8/16] %v791, 128
        %866 = vxpose.xlu0.b32.cont [9/16] %v795, 128
        %867 = vxpose.xlu0.b32.cont [10/16] %v799, 128
        %868 = vxpose.xlu0.b32.cont [11/16] %v803, 128
        %869 = vxpose.xlu0.b32.cont [12/16] %v807, 128
        %870 = vxpose.xlu0.b32.cont [13/16] %v811, 128
        %871 = vxpose.xlu0.b32.cont [14/16] %v815, 128
        %872 = vxpose.xlu0.b32.cont [15/16] %v819, 128
        %873 = vxpose.xlu0.b32.end [16/16] %v823, 128
        %v874 = vpop.trf.xlu0
        %v875 = vpop.trf.xlu0
        %v876 = vpop.trf.xlu0
        %v877 = vpop.trf.xlu0
        %v878 = vpop.trf.xlu0
        %v879 = vpop.trf.xlu0
        %v880 = vpop.trf.xlu0
        %v881 = vpop.trf.xlu0
        %v882 = vpop.trf.xlu0
        %v883 = vpop.trf.xlu0
        %v884 = vpop.trf.xlu0
        %v885 = vpop.trf.xlu0
        %v886 = vpop.trf.xlu0
        %v887 = vpop.trf.xlu0
        %v888 = vpop.trf.xlu0
        %v889 = vpop.trf.xlu0
        %890 = vxpose.xlu0.b32.start [1/16] %v764, 128
        %891 = vxpose.xlu0.b32.cont [2/16] %v768, 128
        %892 = vxpose.xlu0.b32.cont [3/16] %v772, 128
        %893 = vxpose.xlu0.b32.cont [4/16] %v776, 128
        %894 = vxpose.xlu0.b32.cont [5/16] %v780, 128
        %895 = vxpose.xlu0.b32.cont [6/16] %v784, 128
        %896 = vxpose.xlu0.b32.cont [7/16] %v788, 128
        %897 = vxpose.xlu0.b32.cont [8/16] %v792, 128
        %898 = vxpose.xlu0.b32.cont [9/16] %v796, 128
        %899 = vxpose.xlu0.b32.cont [10/16] %v800, 128
        %900 = vxpose.xlu0.b32.cont [11/16] %v804, 128
        %901 = vxpose.xlu0.b32.cont [12/16] %v808, 128
        %902 = vxpose.xlu0.b32.cont [13/16] %v812, 128
        %903 = vxpose.xlu0.b32.cont [14/16] %v816, 128
        %904 = vxpose.xlu0.b32.cont [15/16] %v820, 128
        %905 = vxpose.xlu0.b32.end [16/16] %v824, 128
        %v906 = vpop.trf.xlu0
        %v907 = vpop.trf.xlu0
        %v908 = vpop.trf.xlu0
        %v909 = vpop.trf.xlu0
        %v910 = vpop.trf.xlu0
        %v911 = vpop.trf.xlu0
        %v912 = vpop.trf.xlu0
        %v913 = vpop.trf.xlu0
        %v914 = vpop.trf.xlu0
        %v915 = vpop.trf.xlu0
        %v916 = vpop.trf.xlu0
        %v917 = vpop.trf.xlu0
        %v918 = vpop.trf.xlu0
        %v919 = vpop.trf.xlu0
        %v920 = vpop.trf.xlu0
        %v921 = vpop.trf.xlu0
        %922 = vxpose.xlu0.b32.start [1/16] %v765, 128
        %923 = vxpose.xlu0.b32.cont [2/16] %v769, 128
        %924 = vxpose.xlu0.b32.cont [3/16] %v773, 128
        %925 = vxpose.xlu0.b32.cont [4/16] %v777, 128
        %926 = vxpose.xlu0.b32.cont [5/16] %v781, 128
        %927 = vxpose.xlu0.b32.cont [6/16] %v785, 128
        %928 = vxpose.xlu0.b32.cont [7/16] %v789, 128
        %929 = vxpose.xlu0.b32.cont [8/16] %v793, 128
        %930 = vxpose.xlu0.b32.cont [9/16] %v797, 128
        %931 = vxpose.xlu0.b32.cont [10/16] %v801, 128
        %932 = vxpose.xlu0.b32.cont [11/16] %v805, 128
        %933 = vxpose.xlu0.b32.cont [12/16] %v809, 128
        %934 = vxpose.xlu0.b32.cont [13/16] %v813, 128
        %935 = vxpose.xlu0.b32.cont [14/16] %v817, 128
        %936 = vxpose.xlu0.b32.cont [15/16] %v821, 128
        %937 = vxpose.xlu0.b32.end [16/16] %v825, 128
        %v938 = vpop.trf.xlu0
        %v939 = vpop.trf.xlu0
        %v940 = vpop.trf.xlu0
        %v941 = vpop.trf.xlu0
        %v942 = vpop.trf.xlu0
        %v943 = vpop.trf.xlu0
        %v944 = vpop.trf.xlu0
        %v945 = vpop.trf.xlu0
        %v946 = vpop.trf.xlu0
        %v947 = vpop.trf.xlu0
        %v948 = vpop.trf.xlu0
        %v949 = vpop.trf.xlu0
        %v950 = vpop.trf.xlu0
        %v951 = vpop.trf.xlu0
        %v952 = vpop.trf.xlu0
        %v953 = vpop.trf.xlu0
        %954 = vst [vmem:[%s434] sm:$0xff] %v842
        %955 = vst [vmem:[%s434 + $0x8] sm:$0xff] %v843
        %956 = vst [vmem:[%s434 + $0x10] sm:$0xff] %v844
        %957 = vst [vmem:[%s434 + $0x18] sm:$0xff] %v845
        %958 = vst [vmem:[%s434 + $0x20] sm:$0xff] %v846
        %959 = vst [vmem:[%s434 + $0x28] sm:$0xff] %v847
        %960 = vst [vmem:[%s434 + $0x30] sm:$0xff] %v848
        %961 = vst [vmem:[%s434 + $0x38] sm:$0xff] %v849
        %962 = vst [vmem:[%s434 + $0x40] sm:$0xff] %v850
        %963 = vst [vmem:[%s434 + $0x48] sm:$0xff] %v851
        %964 = vst [vmem:[%s434 + $0x50] sm:$0xff] %v852
        %965 = vst [vmem:[%s434 + $0x58] sm:$0xff] %v853
        %966 = vst [vmem:[%s434 + $0x60] sm:$0xff] %v854
        %967 = vst [vmem:[%s434 + $0x68] sm:$0xff] %v855
        %968 = vst [vmem:[%s434 + $0x70] sm:$0xff] %v856
        %969 = vst [vmem:[%s434 + $0x78] sm:$0xff] %v857
        %970 = vst [vmem:[%s434 + $0x80] sm:$0xff] %v874
        %971 = vst [vmem:[%s434 + $0x88] sm:$0xff] %v875
        %972 = vst [vmem:[%s434 + $0x90] sm:$0xff] %v876
        %973 = vst [vmem:[%s434 + $0x98] sm:$0xff] %v877
        %974 = vst [vmem:[%s434 + $0xa0] sm:$0xff] %v878
        %975 = vst [vmem:[%s434 + $0xa8] sm:$0xff] %v879
        %976 = vst [vmem:[%s434 + $0xb0] sm:$0xff] %v880
        %977 = vst [vmem:[%s434 + $0xb8] sm:$0xff] %v881
        %978 = vst [vmem:[%s434 + $0xc0] sm:$0xff] %v882
        %979 = vst [vmem:[%s434 + $0xc8] sm:$0xff] %v883
        %980 = vst [vmem:[%s434 + $0xd0] sm:$0xff] %v884
        %981 = vst [vmem:[%s434 + $0xd8] sm:$0xff] %v885
        %982 = vst [vmem:[%s434 + $0xe0] sm:$0xff] %v886
        %983 = vst [vmem:[%s434 + $0xe8] sm:$0xff] %v887
        %984 = vst [vmem:[%s434 + $0xf0] sm:$0xff] %v888
        %985 = vst [vmem:[%s434 + $0xf8] sm:$0xff] %v889
        %986 = vst [vmem:[%s434 + $0x100] sm:$0xff] %v906
        %987 = vst [vmem:[%s434 + $0x108] sm:$0xff] %v907
        %988 = vst [vmem:[%s434 + $0x110] sm:$0xff] %v908
        %989 = vst [vmem:[%s434 + $0x118] sm:$0xff] %v909
        %990 = vst [vmem:[%s434 + $0x120] sm:$0xff] %v910
        %991 = vst [vmem:[%s434 + $0x128] sm:$0xff] %v911
        %992 = vst [vmem:[%s434 + $0x130] sm:$0xff] %v912
        %993 = vst [vmem:[%s434 + $0x138] sm:$0xff] %v913
        %994 = vst [vmem:[%s434 + $0x140] sm:$0xff] %v914
        %995 = vst [vmem:[%s434 + $0x148] sm:$0xff] %v915
        %996 = vst [vmem:[%s434 + $0x150] sm:$0xff] %v916
        %997 = vst [vmem:[%s434 + $0x158] sm:$0xff] %v917
        %998 = vst [vmem:[%s434 + $0x160] sm:$0xff] %v918
        %999 = vst [vmem:[%s434 + $0x168] sm:$0xff] %v919
        %1000 = vst [vmem:[%s434 + $0x170] sm:$0xff] %v920
        %1001 = vst [vmem:[%s434 + $0x178] sm:$0xff] %v921
        %1002 = vst [vmem:[%s434 + $0x180] sm:$0xff] %v938
        %1003 = vst [vmem:[%s434 + $0x188] sm:$0xff] %v939
        %1004 = vst [vmem:[%s434 + $0x190] sm:$0xff] %v940
        %1005 = vst [vmem:[%s434 + $0x198] sm:$0xff] %v941
        %1006 = vst [vmem:[%s434 + $0x1a0] sm:$0xff] %v942
        %1007 = vst [vmem:[%s434 + $0x1a8] sm:$0xff] %v943
        %1008 = vst [vmem:[%s434 + $0x1b0] sm:$0xff] %v944
        %1009 = vst [vmem:[%s434 + $0x1b8] sm:$0xff] %v945
        %1010 = vst [vmem:[%s434 + $0x1c0] sm:$0xff] %v946
        %1011 = vst [vmem:[%s434 + $0x1c8] sm:$0xff] %v947
        %1012 = vst [vmem:[%s434 + $0x1d0] sm:$0xff] %v948
        %1013 = vst [vmem:[%s434 + $0x1d8] sm:$0xff] %v949
        %1014 = vst [vmem:[%s434 + $0x1e0] sm:$0xff] %v950
        %1015 = vst [vmem:[%s434 + $0x1e8] sm:$0xff] %v951
        %1016 = vst [vmem:[%s434 + $0x1f0] sm:$0xff] %v952
        %1017 = vst [vmem:[%s434 + $0x1f8] sm:$0xff] %v953
        %v1018 = vld [vmem:[%s381] sm:$0xff]
        %v1019 = vld [vmem:[%s381 + $0x8] sm:$0xff]
        %v1020 = vld [vmem:[%s381 + $0x10] sm:$0xff]
        %v1021 = vld [vmem:[%s381 + $0x18] sm:$0xff]
        %v1022 = vld [vmem:[%s381 + $0x20] sm:$0xff]
        %v1023 = vld [vmem:[%s381 + $0x28] sm:$0xff]
        %v1024 = vld [vmem:[%s381 + $0x30] sm:$0xff]
        %v1025 = vld [vmem:[%s381 + $0x38] sm:$0xff]
        %v1026 = vld [vmem:[%s381 + $0x40] sm:$0xff]
        %v1027 = vld [vmem:[%s381 + $0x48] sm:$0xff]
        %v1028 = vld [vmem:[%s381 + $0x50] sm:$0xff]
        %v1029 = vld [vmem:[%s381 + $0x58] sm:$0xff]
        %v1030 = vld [vmem:[%s381 + $0x60] sm:$0xff]
        %v1031 = vld [vmem:[%s381 + $0x68] sm:$0xff]
        %v1032 = vld [vmem:[%s381 + $0x70] sm:$0xff]
        %v1033 = vld [vmem:[%s381 + $0x78] sm:$0xff]
        %1034 = vxpose.xlu0.b32.start [1/16] %v1018, 128
        %1035 = vxpose.xlu0.b32.cont [2/16] %v1019, 128
        %1036 = vxpose.xlu0.b32.cont [3/16] %v1020, 128
        %1037 = vxpose.xlu0.b32.cont [4/16] %v1021, 128
        %1038 = vxpose.xlu0.b32.cont [5/16] %v1022, 128
        %1039 = vxpose.xlu0.b32.cont [6/16] %v1023, 128
        %1040 = vxpose.xlu0.b32.cont [7/16] %v1024, 128
        %1041 = vxpose.xlu0.b32.cont [8/16] %v1025, 128
        %1042 = vxpose.xlu0.b32.cont [9/16] %v1026, 128
        %1043 = vxpose.xlu0.b32.cont [10/16] %v1027, 128
        %1044 = vxpose.xlu0.b32.cont [11/16] %v1028, 128
        %1045 = vxpose.xlu0.b32.cont [12/16] %v1029, 128
        %1046 = vxpose.xlu0.b32.cont [13/16] %v1030, 128
        %1047 = vxpose.xlu0.b32.cont [14/16] %v1031, 128
        %1048 = vxpose.xlu0.b32.cont [15/16] %v1032, 128
        %1049 = vxpose.xlu0.b32.end [16/16] %v1033, 128
        %v1050 = vpop.trf.xlu0
        %v1051 = vpop.trf.xlu0
        %v1052 = vpop.trf.xlu0
        %v1053 = vpop.trf.xlu0
        %v1054 = vpop.trf.xlu0
        %v1055 = vpop.trf.xlu0
        %v1056 = vpop.trf.xlu0
        %v1057 = vpop.trf.xlu0
        %v1058 = vpop.trf.xlu0
        %v1059 = vpop.trf.xlu0
        %v1060 = vpop.trf.xlu0
        %v1061 = vpop.trf.xlu0
        %v1062 = vpop.trf.xlu0
        %v1063 = vpop.trf.xlu0
        %v1064 = vpop.trf.xlu0
        %v1065 = vpop.trf.xlu0
        %1066 = vst [vmem:[%s441] sm:$0xff] %v1050
        %1067 = vst [vmem:[%s441 + $0x8] sm:$0xff] %v1051
        %1068 = vst [vmem:[%s441 + $0x10] sm:$0xff] %v1052
        %1069 = vst [vmem:[%s441 + $0x18] sm:$0xff] %v1053
        %1070 = vst [vmem:[%s441 + $0x20] sm:$0xff] %v1054
        %1071 = vst [vmem:[%s441 + $0x28] sm:$0xff] %v1055
        %1072 = vst [vmem:[%s441 + $0x30] sm:$0xff] %v1056
        %1073 = vst [vmem:[%s441 + $0x38] sm:$0xff] %v1057
        %1074 = vst [vmem:[%s441 + $0x40] sm:$0xff] %v1058
        %1075 = vst [vmem:[%s441 + $0x48] sm:$0xff] %v1059
        %1076 = vst [vmem:[%s441 + $0x50] sm:$0xff] %v1060
        %1077 = vst [vmem:[%s441 + $0x58] sm:$0xff] %v1061
        %1078 = vst [vmem:[%s441 + $0x60] sm:$0xff] %v1062
        %1079 = vst [vmem:[%s441 + $0x68] sm:$0xff] %v1063
        %1080 = vst [vmem:[%s441 + $0x70] sm:$0xff] %v1064
        %1081 = vst [vmem:[%s441 + $0x78] sm:$0xff] %v1065
        %s1082 = sand.u32 %s149, 1
        %s1083 = scalar_lea.sflag [#allocation4], %s1082
        %s1084 = sand.u32 %s149, 1
        %s1085 = smul.addr %s1084, 512
        %s1086 = scalar_lea.vmem [#allocation10], %s1085
        %s1087 = sand.u32 %s37, 1
        %s1088 = scalar_lea.sflag [#allocation12], %s1087
        %s1089 = sand.u32 %s175, 1
        %s1090 = smul.addr %s1089, 128
        %s1091 = scalar_lea.vmem [#allocation11], %s1090
        %s1092 = sand.u32 %s37, 1
        %s1093 = scalar_lea.sflag [#allocation12], %s1092
        %s1094 = sand.u32 %s201, 1
        %s1095 = smul.addr %s1094, 512
        %s1096 = scalar_lea.vmem [#allocation13], %s1095
        %s1097 = sand.u32 %s227, 1
        %s1098 = scalar_lea.sflag [#allocation15], %s1097
        %s1099 = sand.u32 %s227, 1
        %s1100 = smul.addr %s1099, 128
        %s1101 = scalar_lea.vmem [#allocation14], %s1100
        // Predicated region
        $region53: #{tpu_custom_call.1} parent=35 // pred_check
          %p1102 = pneg %p159
        $region54: #{tpu_custom_call.1} parent=35 // pred_check_branch
          %1104 = sbr.rel (%p1102) target = $region56
        $region55: #{tpu_custom_call.1} parent=35 // pred_region
          %s1106 = ssub.s32 8192, 8192
          %1107 = vsyncadd %s1083, %s1106
          %s1108 = smul.addr %s37, 64
          %s1109 = smul.addr %s1108, 128
          %s1110 = scalar_lea.hbm %s4, %s1109
          %s1111 = sshll.u32 %s1086, 4
          %s1112 = int_to_ptr.vmem [resolvable:$true] %s1111
          %1117 = dma.vmem_to_hbm [thread:$0]  %s1112, 8192, %s1110, %s1083, 128, 128, 8
        $region56: #{tpu_custom_call.1} parent=35 // pred_fallthru
          _
        // Predicated region
        $region57: #{tpu_custom_call.1} parent=35 // pred_check
          %p1118 = pneg %p185
        $region58: #{tpu_custom_call.1} parent=35 // pred_check_branch
          %1120 = sbr.rel (%p1118) target = $region60
        $region59: #{tpu_custom_call.1} parent=35 // pred_region
          %s1122 = ssub.s32 2048, 2048
          %1123 = vsyncadd %s1088, %s1122
          %s1124 = smul.addr %s37, 16
          %s1125 = smul.addr %s1124, 128
          %s1126 = scalar_lea.hbm %s5, %s1125
          %s1127 = sshll.u32 %s1091, 4
          %s1128 = int_to_ptr.vmem [resolvable:$true] %s1127
          %1133 = dma.vmem_to_hbm [thread:$0]  %s1128, 2048, %s1126, %s1088, 128, 128, 8
        $region60: #{tpu_custom_call.1} parent=35 // pred_fallthru
          _
        // Predicated region
        $region61: #{tpu_custom_call.1} parent=35 // pred_check
          %p1134 = pneg %p211
        $region62: #{tpu_custom_call.1} parent=35 // pred_check_branch
          %1136 = sbr.rel (%p1134) target = $region64
        $region63: #{tpu_custom_call.1} parent=35 // pred_region
          %s1138 = ssub.s32 8192, 8192
          %1139 = vsyncadd %s1093, %s1138
          %s1140 = smul.addr %s37, 64
          %s1141 = smul.addr %s1140, 128
          %s1142 = scalar_lea.hbm %s6, %s1141
          %s1143 = sshll.u32 %s1096, 4
          %s1144 = int_to_ptr.vmem [resolvable:$true] %s1143
          %1149 = dma.vmem_to_hbm [thread:$0]  %s1144, 8192, %s1142, %s1093, 128, 128, 8
        $region64: #{tpu_custom_call.1} parent=35 // pred_fallthru
          _
        // Predicated region
        $region65: #{tpu_custom_call.1} parent=35 // pred_check
          %p1150 = pneg %p237
        $region66: #{tpu_custom_call.1} parent=35 // pred_check_branch
          %1152 = sbr.rel (%p1150) target = $region68
        $region67: #{tpu_custom_call.1} parent=35 // pred_region
          %s1154 = ssub.s32 2048, 2048
          %1155 = vsyncadd %s1098, %s1154
          %s1156 = smul.addr %s37, 16
          %s1157 = smul.addr %s1156, 128
          %s1158 = scalar_lea.hbm %s7, %s1157
          %s1159 = sshll.u32 %s1101, 4
          %s1160 = int_to_ptr.vmem [resolvable:$true] %s1159
          %1165 = dma.vmem_to_hbm [thread:$0]  %s1160, 2048, %s1158, %s1098, 128, 128, 8
        $region68: #{tpu_custom_call.1} parent=35 // pred_fallthru
          _
      $region36: #{tpu_custom_call.1} parent=5 // pred_fallthru
        _
      %p1166 = scmp.le.s32.totalorder 2, %s32
      // Predicated region
      $region69: #{tpu_custom_call.1} parent=5 // pred_check
        %p1167 = pneg %p1166
      $region70: #{tpu_custom_call.1} parent=5 // pred_check_branch
        %1169 = sbr.rel (%p1167) target = $region72
      $region71: #{tpu_custom_call.1} parent=5 // pred_region
        %s1170 = ssub.s32 %s32, 2
        // Predicated region
        $region73: #{tpu_custom_call.1} parent=71 // pred_check
          %p1171 = pneg %p165
        $region74: #{tpu_custom_call.1} parent=71 // pred_check_branch
          %1173 = sbr.rel (%p1171) target = $region76
        $region75: #{tpu_custom_call.1} parent=71 // pred_region
          %s1174 = sand.u32 %s150, 1
          %s1175 = scalar_lea.sflag [#allocation4], %s1174
          %s1176 = sand.u32 %s150, 1
          %s1177 = smul.addr %s1176, 512
          %s1178 = scalar_lea.vmem [#allocation10], %s1177
          %1179 = dma.done %s1175, 8192
        $region76: #{tpu_custom_call.1} parent=71 // pred_fallthru
          _
        // Predicated region
        $region77: #{tpu_custom_call.1} parent=71 // pred_check
          %p1180 = pneg %p191
        $region78: #{tpu_custom_call.1} parent=71 // pred_check_branch
          %1182 = sbr.rel (%p1180) target = $region80
        $region79: #{tpu_custom_call.1} parent=71 // pred_region
          %s1183 = sand.u32 %s38, 1
          %s1184 = scalar_lea.sflag [#allocation12], %s1183
          %s1185 = sand.u32 %s176, 1
          %s1186 = smul.addr %s1185, 128
          %s1187 = scalar_lea.vmem [#allocation11], %s1186
          %1188 = dma.done %s1184, 2048
        $region80: #{tpu_custom_call.1} parent=71 // pred_fallthru
          _
        // Predicated region
        $region81: #{tpu_custom_call.1} parent=71 // pred_check
          %p1189 = pneg %p217
        $region82: #{tpu_custom_call.1} parent=71 // pred_check_branch
          %1191 = sbr.rel (%p1189) target = $region84
        $region83: #{tpu_custom_call.1} parent=71 // pred_region
          %s1192 = sand.u32 %s38, 1
          %s1193 = scalar_lea.sflag [#allocation12], %s1192
          %s1194 = sand.u32 %s202, 1
          %s1195 = smul.addr %s1194, 512
          %s1196 = scalar_lea.vmem [#allocation13], %s1195
          %1197 = dma.done %s1193, 8192
        $region84: #{tpu_custom_call.1} parent=71 // pred_fallthru
          _
        // Predicated region
        $region85: #{tpu_custom_call.1} parent=71 // pred_check
          %p1198 = pneg %p243
        $region86: #{tpu_custom_call.1} parent=71 // pred_check_branch
          %1200 = sbr.rel (%p1198) target = $region88
        $region87: #{tpu_custom_call.1} parent=71 // pred_region
          %s1201 = sand.u32 %s228, 1
          %s1202 = scalar_lea.sflag [#allocation15], %s1201
          %s1203 = sand.u32 %s228, 1
          %s1204 = smul.addr %s1203, 128
          %s1205 = scalar_lea.vmem [#allocation14], %s1204
          %1206 = dma.done %s1202, 2048
        $region88: #{tpu_custom_call.1} parent=71 // pred_fallthru
          _
      $region72: #{tpu_custom_call.1} parent=5 // pred_fallthru
        _
    $region6: #{tpu_custom_call.1} parent=1 // loop_footer
      %s36 = sadd.s32 1, %s32
    $region7: #{tpu_custom_call.1} parent=1 // loop_footer_branch
      %31 = sbr.rel target = $region3
    $region8: #{tpu_custom_call.1} parent=1 // loop_exit
      _
    %1207 = vsyncpa [#allocation3], 1
    %s1208 = scalar_lea.sflag [#allocation3], 1
    %1209 = vsyncpa %s1208, 1
    %1210 = vsyncpa [#allocation6], 1
    %s1211 = scalar_lea.sflag [#allocation6], 1
    %1212 = vsyncpa %s1211, 1
    %1213 = vsyncpa [#allocation9], 1
    %s1214 = scalar_lea.sflag [#allocation9], 1
    %1215 = vsyncpa %s1214, 1
    %1216 = vsyncpa [#allocation4], 1
    %s1217 = scalar_lea.sflag [#allocation4], 1
    %1218 = vsyncpa %s1217, 1
    %1219 = vsyncpa [#allocation12], 1
    %s1220 = scalar_lea.sflag [#allocation12], 1
    %1221 = vsyncpa %s1220, 1
    %1222 = vsyncpa [#allocation15], 1
    %s1223 = scalar_lea.sflag [#allocation15], 1
    %1224 = vsyncpa %s1223, 1

</llo_original>
